<compile_context>
chip_gen: v6e
topology: v6e:2x2x1
jax: 0.10.0
libtpu: 0.0.40
codegen_flags: <defaults>
</compile_context>

<pallas_src>
import functools

import numpy as np
import jax
import jax.numpy as jnp
from jax.experimental import pallas as pl
from jax.experimental.pallas import tpu as pltpu


# -----------------------------------------------------------------------------
# Fused Pallas kernel (one grid step handles Bb batch elements)
# -----------------------------------------------------------------------------
def _encoder_fused_kernel(xt_ref, w_ref, b_ref, pool_ref, fcw_ref, fcb_ref,
                          feat_out_ref, attrs_ref, *, Bb, S, C_out):
    """3x3 conv (+bias+ReLU) -> SxS adaptive avg pool -> GAP + linear head.

    Per grid step:
      xt_ref       : (Bb*H*W, 9*C_in)   bf16  tap-stacked (im2col) input
      w_ref        : (9*C_in, C_out)    bf16  reshaped conv weight
      b_ref        : (1, C_out)         f32   conv bias
      pool_ref     : (Bb*S*S, Bb*H*W)   bf16  block-diag adaptive-pool matrix
      fcw_ref      : (C_out, N)         bf16  classifier weight
      fcb_ref      : (1, N)             f32   classifier bias
      feat_out_ref : (Bb*S*S, C_out)    f32
      attrs_ref    : (Bb, N)            f32
    """
    # --- model.extract_features: 3x3 SAME conv as ONE tap-stacked MXU dot ----
    acc = jnp.dot(xt_ref[...], w_ref[...],
                  preferred_element_type=jnp.float32)      # (Bb*HW, C_out) f32
    feat = jnp.maximum(acc + b_ref[...], 0.0)              # elementwise in f32

    # --- AdaptiveAvgPool2d((S, S)): one block-diagonal MXU matmul ------------
    win = jnp.dot(pool_ref[...], feat.astype(jnp.bfloat16),
                  preferred_element_type=jnp.float32)      # (Bb*S*S, C_out)
    feat_out_ref[...] = win.astype(feat_out_ref.dtype)     # dense 2-D store

    # --- model(images): global avg pool + linear head ------------------------
    # Global mean over H*W == mean of the equal-sized window means
    # (requires H % S == 0 and W % S == 0, asserted in the wrapper).
    pooled = jnp.mean(win.reshape(Bb, S * S, C_out), axis=1)   # (Bb, C_out) f32
    logits = jnp.dot(pooled.astype(jnp.bfloat16), fcw_ref[...],
                     preferred_element_type=jnp.float32) + fcb_ref[...]
    attrs_ref[...] = logits.astype(attrs_ref.dtype)        # (Bb, N) once/block


# -----------------------------------------------------------------------------
# Wrapper
# -----------------------------------------------------------------------------
def encoder_forward(images_nchw, conv_w, conv_b, fc_w, fc_b, enc_image_size,
                    batch_block=None):
    """Returns (encoder_features (B,S,S,D), encoder_attrs (B,num_classes))."""
    B, C_in, H, W = images_nchw.shape
    C_out = conv_w.shape[-1]
    N = fc_w.shape[1]
    S = enc_image_size
    assert H % S == 0 and W % S == 0, "adaptive pool assumes divisible windows"
    wh, ww = H // S, W // S
    HW = H * W
    K = 9 * C_in

    # Whole batch in one grid step by default (best for 1-TC v5e/v6e).
    # TODO(synk): on v7x, call with batch_block=B//2 and mark the batch-block
    # axis pltpu.CORE_PARALLEL so both TensorCores are used.
    Bb = B if batch_block is None else batch_block
    assert B % Bb == 0, "batch must be divisible by batch_block"
    n_steps = B // Bb

    # --- host-side tap stacking (im2col) --------------------------------------
    # TODO(synk): at real backbone sizes do this in-kernel with halo DMAs to
    # avoid the 9x HBM expansion; at 16x16 it is negligible and buys the
    # single-dot conv plus a 27-wide (vs 3-wide) lane axis.
    x = jnp.transpose(images_nchw, (0, 2, 3, 1))               # NCHW -> NHWC
    xpad = jnp.pad(x, ((0, 0), (1, 1), (1, 1), (0, 0)))        # SAME halo
    taps = jnp.concatenate(
        [xpad[:, dh:dh + H, dw:dw + W, :]
         for dh in range(3) for dw in range(3)],
        axis=-1)                                               # (B, H, W, 9*C_in)
    xtaps = taps.reshape(B * HW, K).astype(jnp.bfloat16)       # (B*HW, 27)

    w27 = conv_w.reshape(K, C_out).astype(jnp.bfloat16)        # HWIO row-major
    b2 = conv_b.reshape(1, C_out).astype(jnp.float32)
    fcw = fc_w.astype(jnp.bfloat16)
    fcb2 = fc_b.reshape(1, N).astype(jnp.float32)

    # Block-diagonal adaptive-pool matrix: weight 1/(wh*ww) on each window's
    # pixels (1/16 is exact in bf16 at the demo sizes), block-diag over Bb.
    r = np.arange(HW)
    win_id = (r // W // wh) * S + (r % W) // ww                # window of pixel
    P = (np.arange(S * S)[:, None] == win_id[None, :]).astype(np.float32)
    P /= float(wh * ww)                                        # (S*S, H*W)
    pool_bd = jnp.asarray(np.kron(np.eye(Bb, dtype=np.float32), P),
                          dtype=jnp.bfloat16)                  # (Bb*S*S, Bb*HW)

    kernel = functools.partial(_encoder_fused_kernel, Bb=Bb, S=S, C_out=C_out)
    feat_flat, attrs = pl.pallas_call(
        kernel,
        out_shape=(
            jax.ShapeDtypeStruct((B * S * S, C_out), jnp.float32),
            jax.ShapeDtypeStruct((B, N), jnp.float32),
        ),
        grid=(n_steps,),
        in_specs=[
            pl.BlockSpec((Bb * HW, K), lambda i: (i, 0)),
            # Grid-invariant operands below; at these sizes default double
            # buffering costs <20 KiB, so pipeline_mode=pl.Buffered(1) is left
            # as a TODO for when encoder_dim / H' grow (v7x has 64 MiB VMEM).
            pl.BlockSpec((K, C_out), lambda i: (0, 0)),
            pl.BlockSpec((1, C_out), lambda i: (0, 0)),
            pl.BlockSpec((Bb * S * S, Bb * HW), lambda i: (0, 0)),
            pl.BlockSpec((C_out, N), lambda i: (0, 0)),
            pl.BlockSpec((1, N), lambda i: (0, 0)),
        ],
        out_specs=(
            pl.BlockSpec((Bb * S * S, C_out), lambda i: (i, 0)),
            pl.BlockSpec((Bb, N), lambda i: (i, 0)),
        ),
        compiler_params=pltpu.CompilerParams(
            dimension_semantics=("arbitrary",)),
    )(xtaps, w27, b2, pool_bd, fcw, fcb2)

    encoder_features = feat_flat.reshape(B, S, S, C_out)   # free row-major view
    encoder_attrs = attrs
    return encoder_features, encoder_attrs


# -----------------------------------------------------------------------------
# Pure-JAX reference (same bf16-operand / f32-accumulation arithmetic)
# -----------------------------------------------------------------------------
def _reference(images_nchw, conv_w, conv_b, fc_w, fc_b, S):
    x = jnp.transpose(images_nchw, (0, 2, 3, 1))
    feat = jax.lax.conv_general_dilated(
        x.astype(jnp.bfloat16), conv_w.astype(jnp.bfloat16), (1, 1), "SAME",
        dimension_numbers=("NHWC", "HWIO", "NHWC"),
        preferred_element_type=jnp.float32)
    feat = jnp.maximum(feat + conv_b, 0.0)
    featb = feat.astype(jnp.bfloat16).astype(jnp.float32)   # pool operand dtype
    B, H, W, C = feat.shape
    wh, ww = H // S, W // S
    enc = featb.reshape(B, S, wh, S, ww, C).mean(axis=(2, 4))
    pooled = featb.mean(axis=(1, 2))
    attrs = jnp.dot(pooled.astype(jnp.bfloat16), fc_w.astype(jnp.bfloat16),
                    preferred_element_type=jnp.float32) + fc_b
    return enc, attrs


# -----------------------------------------------------------------------------
# Main
# -----------------------------------------------------------------------------
if __name__ == "__main__":
    B, C_IN, H, W = 2, 3, 16, 16
    ENCODER_DIM = 32
    ENC_IMAGE_SIZE = 4
    NUM_CLASSES = 10

    key = jax.random.PRNGKey(0)
    k_img, k_conv, k_cb, k_fcw, k_fcb = jax.random.split(key, 5)

    images = jax.random.normal(k_img, (B, C_IN, H, W), jnp.float32)   # NCHW
    conv_w = 0.1 * jax.random.normal(k_conv, (3, 3, C_IN, ENCODER_DIM),
                                     jnp.float32)
    conv_b = 0.05 * jax.random.normal(k_cb, (ENCODER_DIM,), jnp.float32)
    fc_w = 0.1 * jax.random.normal(k_fcw, (ENCODER_DIM, NUM_CLASSES),
                                   jnp.float32)
    fc_b = 0.01 * jax.random.normal(k_fcb, (NUM_CLASSES,), jnp.float32)

    feats, attrs = encoder_forward(images, conv_w, conv_b, fc_w, fc_b,
                                   ENC_IMAGE_SIZE)
    jax.block_until_ready((feats, attrs))

    assert feats.shape == (B, ENC_IMAGE_SIZE, ENC_IMAGE_SIZE, ENCODER_DIM)
    assert attrs.shape == (B, NUM_CLASSES)
    assert feats.dtype == jnp.float32 and attrs.dtype == jnp.float32

    # Numerical check vs a reference that uses the same bf16 matmul operands
    # with f32 accumulation (only summation-order differences remain).
    ref_feats, ref_attrs = _reference(images, conv_w, conv_b, fc_w, fc_b,
                                      ENC_IMAGE_SIZE)
    assert jnp.allclose(feats, ref_feats, atol=2e-3, rtol=2e-3), \
        "features mismatch"
    assert jnp.allclose(attrs, ref_attrs, atol=2e-3, rtol=2e-3), \
        "attrs mismatch"

    print("KERNEL_OK")
</pallas_src>

<mosaic_0001>
module attributes {stable_mosaic.version = 11 : i64} {
  func.func @_encoder_fused_kernel(%arg0: i32, %arg1: memref<512x27xbf16, #tpu.memory_space<vmem>>, %arg2: memref<27x32xbf16, #tpu.memory_space<vmem>>, %arg3: memref<1x32xf32, #tpu.memory_space<vmem>>, %arg4: memref<32x512xbf16, #tpu.memory_space<vmem>>, %arg5: memref<32x10xbf16, #tpu.memory_space<vmem>>, %arg6: memref<1x10xf32, #tpu.memory_space<vmem>>, %arg7: memref<32x32xf32, #tpu.memory_space<vmem>>, %arg8: memref<2x10xf32, #tpu.memory_space<vmem>>) attributes {dimension_semantics = [#tpu.dimension_semantics<arbitrary>], iteration_bounds = array<i64: 1>, scalar_prefetch = 0 : i64, scratch_operands = 0 : i64, tpu.core_type = #tpu.core_type<tc>, window_params = [{transform_indices = @transform_0, window_bounds = array<i64: 512, 27>}, {pipeline_mode = #tpu.pipeline_mode<synchronous>, transform_indices = @transform_1, window_bounds = array<i64: 27, 32>}, {pipeline_mode = #tpu.pipeline_mode<synchronous>, transform_indices = @transform_2, window_bounds = array<i64: 1, 32>}, {pipeline_mode = #tpu.pipeline_mode<synchronous>, transform_indices = @transform_3, window_bounds = array<i64: 32, 512>}, {pipeline_mode = #tpu.pipeline_mode<synchronous>, transform_indices = @transform_4, window_bounds = array<i64: 32, 10>}, {pipeline_mode = #tpu.pipeline_mode<synchronous>, transform_indices = @transform_5, window_bounds = array<i64: 1, 10>}, {transform_indices = @transform_6, window_bounds = array<i64: 32, 32>}, {transform_indices = @transform_7, window_bounds = array<i64: 2, 10>}]} {
    %c0 = arith.constant 0 : index
    %c0_0 = arith.constant 0 : index
    %0 = vector.load %arg1[%c0, %c0_0] : memref<512x27xbf16, #tpu.memory_space<vmem>>, vector<512x27xbf16>
    %c0_1 = arith.constant 0 : index
    %c0_2 = arith.constant 0 : index
    %1 = vector.load %arg2[%c0_1, %c0_2] : memref<27x32xbf16, #tpu.memory_space<vmem>>, vector<27x32xbf16>
    %cst = arith.constant dense<0.000000e+00> : vector<512x32xf32>
    %2 = tpu.matmul %0, %1, %cst {dimension_numbers = #tpu.dot_dimension_numbers<[1], [0], [0], [1], [0, 0, 1, 1], [], []>} : vector<512x27xbf16>, vector<27x32xbf16>, vector<512x32xf32> -> vector<512x32xf32>
    %c0_3 = arith.constant 0 : index
    %c0_4 = arith.constant 0 : index
    %3 = vector.load %arg3[%c0_3, %c0_4] : memref<1x32xf32, #tpu.memory_space<vmem>>, vector<1x32xf32>
    %4 = vector.broadcast %3 : vector<1x32xf32> to vector<512x32xf32>
    %5 = arith.addf %2, %4 : vector<512x32xf32>
    %cst_5 = arith.constant 0.000000e+00 : f32
    %6 = vector.broadcast %cst_5 : f32 to vector<512x32xf32>
    %7 = arith.maximumf %5, %6 : vector<512x32xf32>
    %c0_6 = arith.constant 0 : index
    %c0_7 = arith.constant 0 : index
    %8 = vector.load %arg4[%c0_6, %c0_7] : memref<32x512xbf16, #tpu.memory_space<vmem>>, vector<32x512xbf16>
    %9 = arith.truncf %7 : vector<512x32xf32> to vector<512x32xbf16>
    %cst_8 = arith.constant dense<0.000000e+00> : vector<32x32xf32>
    %10 = tpu.matmul %8, %9, %cst_8 {dimension_numbers = #tpu.dot_dimension_numbers<[1], [0], [0], [1], [0, 0, 1, 1], [], []>} : vector<32x512xbf16>, vector<512x32xbf16>, vector<32x32xf32> -> vector<32x32xf32>
    %c0_9 = arith.constant 0 : index
    %c0_10 = arith.constant 0 : index
    %11 = vector.load %arg7[%c0_9, %c0_10] : memref<32x32xf32, #tpu.memory_space<vmem>>, vector<32x32xf32>
    tpu.vector_store %arg7[%c0_9, %c0_10], %10 {strides = array<i32>} : memref<32x32xf32, #tpu.memory_space<vmem>>, vector<32x32xf32>,
    %12 = vector.shape_cast %10 : vector<32x32xf32> to vector<2x16x32xf32>
    %cst_11 = arith.constant dense<0.000000e+00> : vector<2x32xf32>
    %13 = vector.multi_reduction <add>, %12, %cst_11 [1] : vector<2x16x32xf32> to vector<2x32xf32>
    %cst_12 = arith.constant 1.600000e+01 : f32
    %14 = vector.broadcast %cst_12 : f32 to vector<2x32xf32>
    %15 = arith.divf %13, %14 : vector<2x32xf32>
    %16 = arith.truncf %15 : vector<2x32xf32> to vector<2x32xbf16>
    %c0_13 = arith.constant 0 : index
    %c0_14 = arith.constant 0 : index
    %17 = vector.load %arg5[%c0_13, %c0_14] : memref<32x10xbf16, #tpu.memory_space<vmem>>, vector<32x10xbf16>
    %cst_15 = arith.constant dense<0.000000e+00> : vector<2x10xf32>
    %18 = tpu.matmul %16, %17, %cst_15 {dimension_numbers = #tpu.dot_dimension_numbers<[1], [0], [0], [1], [0, 0, 1, 1], [], []>} : vector<2x32xbf16>, vector<32x10xbf16>, vector<2x10xf32> -> vector<2x10xf32>
    %c0_16 = arith.constant 0 : index
    %c0_17 = arith.constant 0 : index
    %19 = vector.load %arg6[%c0_16, %c0_17] : memref<1x10xf32, #tpu.memory_space<vmem>>, vector<1x10xf32>
    %20 = vector.broadcast %19 : vector<1x10xf32> to vector<2x10xf32>
    %21 = arith.addf %18, %20 : vector<2x10xf32>
    %c0_18 = arith.constant 0 : index
    %c0_19 = arith.constant 0 : index
    %22 = vector.load %arg8[%c0_18, %c0_19] : memref<2x10xf32, #tpu.memory_space<vmem>>, vector<2x10xf32>
    tpu.vector_store %arg8[%c0_18, %c0_19], %21 {strides = array<i32>} : memref<2x10xf32, #tpu.memory_space<vmem>>, vector<2x10xf32>,
    return
  }
  func.func @transform_0(%arg0: i32) -> (i32, i32) {
    %c0_i32 = arith.constant 0 : i32
    %c0_i32_0 = arith.constant 0 : i32
    return %arg0, %c0_i32 : i32, i32
  }
  func.func @transform_1(%arg0: i32) -> (i32, i32) {
    %c0_i32 = arith.constant 0 : i32
    %c0_i32_0 = arith.constant 0 : i32
    %c0_i32_1 = arith.constant 0 : i32
    return %c0_i32, %c0_i32_0 : i32, i32
  }
  func.func @transform_2(%arg0: i32) -> (i32, i32) {
    %c0_i32 = arith.constant 0 : i32
    %c0_i32_0 = arith.constant 0 : i32
    %c0_i32_1 = arith.constant 0 : i32
    return %c0_i32, %c0_i32_0 : i32, i32
  }
  func.func @transform_3(%arg0: i32) -> (i32, i32) {
    %c0_i32 = arith.constant 0 : i32
    %c0_i32_0 = arith.constant 0 : i32
    %c0_i32_1 = arith.constant 0 : i32
    return %c0_i32, %c0_i32_0 : i32, i32
  }
  func.func @transform_4(%arg0: i32) -> (i32, i32) {
    %c0_i32 = arith.constant 0 : i32
    %c0_i32_0 = arith.constant 0 : i32
    %c0_i32_1 = arith.constant 0 : i32
    return %c0_i32, %c0_i32_0 : i32, i32
  }
  func.func @transform_5(%arg0: i32) -> (i32, i32) {
    %c0_i32 = arith.constant 0 : i32
    %c0_i32_0 = arith.constant 0 : i32
    %c0_i32_1 = arith.constant 0 : i32
    return %c0_i32, %c0_i32_0 : i32, i32
  }
  func.func @transform_6(%arg0: i32) -> (i32, i32) {
    %c0_i32 = arith.constant 0 : i32
    %c0_i32_0 = arith.constant 0 : i32
    return %arg0, %c0_i32 : i32, i32
  }
  func.func @transform_7(%arg0: i32) -> (i32, i32) {
    %c0_i32 = arith.constant 0 : i32
    %c0_i32_0 = arith.constant 0 : i32
    return %arg0, %c0_i32 : i32, i32
  }
}

</mosaic_0001>

<llo_original>
// kernel: tpu_custom_call.1
$region0: #{tpu_custom_call.1}
  #allocation0 [shape = 'u32[]', space=smem, size = 0x4, offset = 0x4, fixed_abs, tag = 'smem constant byte address 0x4 - core index']
  #allocation1 [shape = 'u32[144,128]{1,0:T(1,128)}', space=vmem, size = 0x12000, scoped, tag = 'internal scratch']
  %s0 = inlined_call_operand.vmem [shape: bf16[512,27], index: 0, kind: input, shape index: {}]
  %s1 = inlined_call_operand.vmem [shape: bf16[27,32], index: 1, kind: input, shape index: {}]
  %s2 = inlined_call_operand.vmem [shape: f32[1,32], index: 2, kind: input, shape index: {}]
  %s3 = inlined_call_operand.vmem [shape: bf16[32,512], index: 3, kind: input, shape index: {}]
  %s4 = inlined_call_operand.vmem [shape: bf16[32,10], index: 4, kind: input, shape index: {}]
  %s5 = inlined_call_operand.vmem [shape: f32[1,10], index: 5, kind: input, shape index: {}]
  %s6 = inlined_call_operand.hbm [shape: f32[32,32], index: 6, kind: output, shape index: {0}]
  %s7 = inlined_call_operand.hbm [shape: f32[2,10], index: 7, kind: output, shape index: {1}]
  %8 = xla_tuple %s6, %s7
  %s9 = sld [smem:[#allocation0]]
  $region42: #{tpu_custom_call.1} parent=0
    _
  %s11 = ssub.s32 1, %s9
  %s12 = scalar_select 0, %s11, %s9
  $region1: #{tpu_custom_call.1} parent=0
    #allocation2 [shape = 'u8[16384]{0}', space=vmem, size = 0x4000, scoped, tag = 'output window, operand 0, single buffered']
    #allocation3 [shape = 's32[1]{0}', space=sflag, size = 0x4, scoped, tag = 'scoped memory for tpu_custom_call.1']
    #allocation4 [shape = 'u8[1024]{0}', space=vmem, size = 0x400, scoped, tag = 'output window, operand 1, single buffered']
    #allocation5 [shape = 's32[1]{0}', space=sflag, size = 0x4, scoped, tag = 'scoped memory for tpu_custom_call.1']
    %13 = vsyncpa [#allocation3], 0
    %14 = vsyncpa [#allocation5], 0
    // Predicated region
    $region2: #{tpu_custom_call.1} parent=1 // pred_check
      _
    $region3: #{tpu_custom_call.1} parent=1 // pred_check_branch
      %16 = sbr.rel (0) target = $region5
    $region4: #{tpu_custom_call.1} parent=1 // pred_region
      _
    $region5: #{tpu_custom_call.1} parent=1 // pred_fallthru
      _
    // Predicated region
    $region6: #{tpu_custom_call.1} parent=1 // pred_check
      _
    $region7: #{tpu_custom_call.1} parent=1 // pred_check_branch
      %18 = sbr.rel (0) target = $region9
    $region8: #{tpu_custom_call.1} parent=1 // pred_region
      _
    $region9: #{tpu_custom_call.1} parent=1 // pred_fallthru
      _
    // Predicated region
    $region10: #{tpu_custom_call.1} parent=1 // pred_check
      _
    $region11: #{tpu_custom_call.1} parent=1 // pred_check_branch
      %20 = sbr.rel (0) target = $region13
    $region12: #{tpu_custom_call.1} parent=1 // pred_region
      _
    $region13: #{tpu_custom_call.1} parent=1 // pred_fallthru
      _
    // Predicated region
    $region14: #{tpu_custom_call.1} parent=1 // pred_check
      _
    $region15: #{tpu_custom_call.1} parent=1 // pred_check_branch
      %22 = sbr.rel (0) target = $region17
    $region16: #{tpu_custom_call.1} parent=1 // pred_region
      _
    $region17: #{tpu_custom_call.1} parent=1 // pred_fallthru
      _
    // Predicated region
    $region18: #{tpu_custom_call.1} parent=1 // pred_check
      _
    $region19: #{tpu_custom_call.1} parent=1 // pred_check_branch
      %24 = sbr.rel (0) target = $region21
    $region20: #{tpu_custom_call.1} parent=1 // pred_region
      _
    $region21: #{tpu_custom_call.1} parent=1 // pred_fallthru
      _
    // Predicated region
    $region22: #{tpu_custom_call.1} parent=1 // pred_check
      _
    $region23: #{tpu_custom_call.1} parent=1 // pred_check_branch
      %26 = sbr.rel (0) target = $region25
    $region24: #{tpu_custom_call.1} parent=1 // pred_region
      _
    $region25: #{tpu_custom_call.1} parent=1 // pred_fallthru
      _
    %v28 = vld [vmem:[%s0] sm:$0xf]
    %v29 = vld [vmem:[%s0 + $0x4] sm:$0xf]
    %v30 = vld [vmem:[%s0 + $0x8] sm:$0xf]
    %v31 = vld [vmem:[%s0 + $0xc] sm:$0xf]
    %v32 = vld [vmem:[%s0 + $0x10] sm:$0xf]
    %v33 = vld [vmem:[%s0 + $0x14] sm:$0xf]
    %v34 = vld [vmem:[%s0 + $0x18] sm:$0xf]
    %v35 = vld [vmem:[%s0 + $0x1c] sm:$0xf]
    %v36 = vld [vmem:[%s0 + $0x20] sm:$0xf]
    %v37 = vld [vmem:[%s0 + $0x24] sm:$0xf]
    %v38 = vld [vmem:[%s0 + $0x28] sm:$0xf]
    %v39 = vld [vmem:[%s0 + $0x2c] sm:$0xf]
    %v40 = vld [vmem:[%s0 + $0x30] sm:$0xf]
    %v41 = vld [vmem:[%s0 + $0x34] sm:$0xf]
    %v42 = vld [vmem:[%s0 + $0x38] sm:$0xf]
    %v43 = vld [vmem:[%s0 + $0x3c] sm:$0xf]
    %v44 = vld [vmem:[%s0 + $0x40] sm:$0xf]
    %v45 = vld [vmem:[%s0 + $0x44] sm:$0xf]
    %v46 = vld [vmem:[%s0 + $0x48] sm:$0xf]
    %v47 = vld [vmem:[%s0 + $0x4c] sm:$0xf]
    %v48 = vld [vmem:[%s0 + $0x50] sm:$0xf]
    %v49 = vld [vmem:[%s0 + $0x54] sm:$0xf]
    %v50 = vld [vmem:[%s0 + $0x58] sm:$0xf]
    %v51 = vld [vmem:[%s0 + $0x5c] sm:$0xf]
    %v52 = vld [vmem:[%s0 + $0x60] sm:$0xf]
    %v53 = vld [vmem:[%s0 + $0x64] sm:$0xf]
    %v54 = vld [vmem:[%s0 + $0x68] sm:$0xf]
    %v55 = vld [vmem:[%s0 + $0x6c] sm:$0xf]
    %v56 = vld [vmem:[%s0 + $0x70] sm:$0xf]
    %v57 = vld [vmem:[%s0 + $0x74] sm:$0xf]
    %v58 = vld [vmem:[%s0 + $0x78] sm:$0xf]
    %v59 = vld [vmem:[%s0 + $0x7c] sm:$0xf]
    %v60 = vld [vmem:[%s0 + $0x80] sm:$0xf]
    %v61 = vld [vmem:[%s0 + $0x84] sm:$0xf]
    %v62 = vld [vmem:[%s0 + $0x88] sm:$0xf]
    %v63 = vld [vmem:[%s0 + $0x8c] sm:$0xf]
    %v64 = vld [vmem:[%s0 + $0x90] sm:$0xf]
    %v65 = vld [vmem:[%s0 + $0x94] sm:$0xf]
    %v66 = vld [vmem:[%s0 + $0x98] sm:$0xf]
    %v67 = vld [vmem:[%s0 + $0x9c] sm:$0xf]
    %v68 = vld [vmem:[%s0 + $0xa0] sm:$0xf]
    %v69 = vld [vmem:[%s0 + $0xa4] sm:$0xf]
    %v70 = vld [vmem:[%s0 + $0xa8] sm:$0xf]
    %v71 = vld [vmem:[%s0 + $0xac] sm:$0xf]
    %v72 = vld [vmem:[%s0 + $0xb0] sm:$0xf]
    %v73 = vld [vmem:[%s0 + $0xb4] sm:$0xf]
    %v74 = vld [vmem:[%s0 + $0xb8] sm:$0xf]
    %v75 = vld [vmem:[%s0 + $0xbc] sm:$0xf]
    %v76 = vld [vmem:[%s0 + $0xc0] sm:$0xf]
    %v77 = vld [vmem:[%s0 + $0xc4] sm:$0xf]
    %v78 = vld [vmem:[%s0 + $0xc8] sm:$0xf]
    %v79 = vld [vmem:[%s0 + $0xcc] sm:$0xf]
    %v80 = vld [vmem:[%s0 + $0xd0] sm:$0xf]
    %v81 = vld [vmem:[%s0 + $0xd4] sm:$0xf]
    %v82 = vld [vmem:[%s0 + $0xd8] sm:$0xf]
    %v83 = vld [vmem:[%s0 + $0xdc] sm:$0xf]
    %v84 = vld [vmem:[%s0 + $0xe0] sm:$0xf]
    %v85 = vld [vmem:[%s0 + $0xe4] sm:$0xf]
    %v86 = vld [vmem:[%s0 + $0xe8] sm:$0xf]
    %v87 = vld [vmem:[%s0 + $0xec] sm:$0xf]
    %v88 = vld [vmem:[%s0 + $0xf0] sm:$0xf]
    %v89 = vld [vmem:[%s0 + $0xf4] sm:$0xf]
    %v90 = vld [vmem:[%s0 + $0xf8] sm:$0xf]
    %v91 = vld [vmem:[%s0 + $0xfc] sm:$0xf]
    %v92 = vld [vmem:[%s1] sm:$0xf]
    %v93 = vld [vmem:[%s1 + $0x4] sm:$0xf]
    %v94 = vld [vmem:[%s1 + $0x8] sm:$0xf]
    %v95 = vld [vmem:[%s1 + $0xc] sm:$0x3]
    %v96 = vld [vmem:[%s2] sm:$0x1]
    %v98 = vlaneseq
    %v99 = vshrl.u32 %v98, 7
    %v100 = vsub.s32 0, %v99
    %v101 = vrot.slane %v96, %v100
    %v167 = vunpack.c.l.b16 %v28
    %v168 = vunpack.c.l.b16 %v29
    %v169 = vunpack.c.l.b16 %v30
    %v170 = vunpack.c.l.b16 %v31
    %v171 = vunpack.c.l.b16 %v32
    %v172 = vunpack.c.l.b16 %v33
    %v173 = vunpack.c.l.b16 %v34
    %v174 = vunpack.c.l.b16 %v35
    %v175 = vunpack.c.l.b16 %v36
    %v176 = vunpack.c.l.b16 %v37
    %v177 = vunpack.c.l.b16 %v38
    %v178 = vunpack.c.l.b16 %v39
    %v179 = vunpack.c.l.b16 %v40
    %v180 = vunpack.c.l.b16 %v41
    %v181 = vunpack.c.l.b16 %v42
    %v182 = vunpack.c.l.b16 %v43
    %v183 = vunpack.c.l.b16 %v44
    %v184 = vunpack.c.l.b16 %v45
    %v185 = vunpack.c.l.b16 %v46
    %v186 = vunpack.c.l.b16 %v47
    %v187 = vunpack.c.l.b16 %v48
    %v188 = vunpack.c.l.b16 %v49
    %v189 = vunpack.c.l.b16 %v50
    %v190 = vunpack.c.l.b16 %v51
    %v191 = vunpack.c.l.b16 %v52
    %v192 = vunpack.c.l.b16 %v53
    %v193 = vunpack.c.l.b16 %v54
    %v194 = vunpack.c.l.b16 %v55
    %v195 = vunpack.c.l.b16 %v56
    %v196 = vunpack.c.l.b16 %v57
    %v197 = vunpack.c.l.b16 %v58
    %v198 = vunpack.c.l.b16 %v59
    %v199 = vunpack.c.l.b16 %v60
    %v200 = vunpack.c.l.b16 %v61
    %v201 = vunpack.c.l.b16 %v62
    %v202 = vunpack.c.l.b16 %v63
    %v203 = vunpack.c.l.b16 %v64
    %v204 = vunpack.c.l.b16 %v65
    %v205 = vunpack.c.l.b16 %v66
    %v206 = vunpack.c.l.b16 %v67
    %v207 = vunpack.c.l.b16 %v68
    %v208 = vunpack.c.l.b16 %v69
    %v209 = vunpack.c.l.b16 %v70
    %v210 = vunpack.c.l.b16 %v71
    %v211 = vunpack.c.l.b16 %v72
    %v212 = vunpack.c.l.b16 %v73
    %v213 = vunpack.c.l.b16 %v74
    %v214 = vunpack.c.l.b16 %v75
    %v215 = vunpack.c.l.b16 %v76
    %v216 = vunpack.c.l.b16 %v77
    %v217 = vunpack.c.l.b16 %v78
    %v218 = vunpack.c.l.b16 %v79
    %v219 = vunpack.c.l.b16 %v80
    %v220 = vunpack.c.l.b16 %v81
    %v221 = vunpack.c.l.b16 %v82
    %v222 = vunpack.c.l.b16 %v83
    %v223 = vunpack.c.l.b16 %v84
    %v224 = vunpack.c.l.b16 %v85
    %v225 = vunpack.c.l.b16 %v86
    %v226 = vunpack.c.l.b16 %v87
    %v227 = vunpack.c.l.b16 %v88
    %v228 = vunpack.c.l.b16 %v89
    %v229 = vunpack.c.l.b16 %v90
    %v230 = vunpack.c.l.b16 %v91
    %v231 = vpack.c.b16 %v168, %v167
    %v232 = vpack.c.b16 %v170, %v169
    %v233 = vpack.c.b16 %v172, %v171
    %v234 = vpack.c.b16 %v174, %v173
    %v235 = vpack.c.b16 %v176, %v175
    %v236 = vpack.c.b16 %v178, %v177
    %v237 = vpack.c.b16 %v180, %v179
    %v238 = vpack.c.b16 %v182, %v181
    %v239 = vpack.c.b16 %v184, %v183
    %v240 = vpack.c.b16 %v186, %v185
    %v241 = vpack.c.b16 %v188, %v187
    %v242 = vpack.c.b16 %v190, %v189
    %v243 = vpack.c.b16 %v192, %v191
    %v244 = vpack.c.b16 %v194, %v193
    %v245 = vpack.c.b16 %v196, %v195
    %v246 = vpack.c.b16 %v198, %v197
    %v247 = vpack.c.b16 %v200, %v199
    %v248 = vpack.c.b16 %v202, %v201
    %v249 = vpack.c.b16 %v204, %v203
    %v250 = vpack.c.b16 %v206, %v205
    %v251 = vpack.c.b16 %v208, %v207
    %v252 = vpack.c.b16 %v210, %v209
    %v253 = vpack.c.b16 %v212, %v211
    %v254 = vpack.c.b16 %v214, %v213
    %v255 = vpack.c.b16 %v216, %v215
    %v256 = vpack.c.b16 %v218, %v217
    %v257 = vpack.c.b16 %v220, %v219
    %v258 = vpack.c.b16 %v222, %v221
    %v259 = vpack.c.b16 %v224, %v223
    %v260 = vpack.c.b16 %v226, %v225
    %v261 = vpack.c.b16 %v228, %v227
    %v262 = vpack.c.b16 %v230, %v229
    %v267 = vunpack.c.l.b16 %v92
    %v268 = vunpack.c.l.b16 %v93
    %v269 = vunpack.c.l.b16 %v94
    %v270 = vunpack.c.l.b16 %v95
    %v271 = vpack.c.b16 %v268, %v267
    %v272 = vpack.c.b16 %v270, %v269
    %vm274 = vcmask 220160
    %v276 = vsel %vm274, %v231, 0
    %v279 = vsel %vm274, %v232, 0
    %v282 = vsel %vm274, %v233, 0
    %v285 = vsel %vm274, %v234, 0
    %v288 = vsel %vm274, %v235, 0
    %v291 = vsel %vm274, %v236, 0
    %v294 = vsel %vm274, %v237, 0
    %v297 = vsel %vm274, %v238, 0
    %v300 = vsel %vm274, %v239, 0
    %v303 = vsel %vm274, %v240, 0
    %v306 = vsel %vm274, %v241, 0
    %v309 = vsel %vm274, %v242, 0
    %v312 = vsel %vm274, %v243, 0
    %v315 = vsel %vm274, %v244, 0
    %v318 = vsel %vm274, %v245, 0
    %v321 = vsel %vm274, %v246, 0
    %v324 = vsel %vm274, %v247, 0
    %v327 = vsel %vm274, %v248, 0
    %v330 = vsel %vm274, %v249, 0
    %v333 = vsel %vm274, %v250, 0
    %v336 = vsel %vm274, %v251, 0
    %v339 = vsel %vm274, %v252, 0
    %v342 = vsel %vm274, %v253, 0
    %v345 = vsel %vm274, %v254, 0
    %v348 = vsel %vm274, %v255, 0
    %v351 = vsel %vm274, %v256, 0
    %v354 = vsel %vm274, %v257, 0
    %v357 = vsel %vm274, %v258, 0
    %v360 = vsel %vm274, %v259, 0
    %v363 = vsel %vm274, %v260, 0
    %v366 = vsel %vm274, %v261, 0
    %v369 = vsel %vm274, %v262, 0
    %vm371 = vcmask 1044480
    %vm372 = vcmask 1045504
    %v373 = vsel %vm371, 4294967295, 65535
    %v374 = vsel %vm372, %v373, 0
    %v376 = vand.u32 %v272, %v374
    %378 = vmatprep.subr.bf16.mxu0 0
    %379 = vmatpush1.bf16.msra.mxu0 0
    %380 = vmatprep.subr.bf16.mxu0 0
    %381 = vmatpush1.bf16.msra.mxu0 0
    %382 = vmatprep.subr.bf16.mxu0 0
    %383 = vmatpush1.bf16.msra.mxu0 0
    %384 = vmatprep.subr.bf16.mxu0 0
    %385 = vmatpush1.bf16.msra.mxu0 0
    %386 = vmatprep.subr.bf16.mxu0 0
    %387 = vmatpush1.bf16.msra.mxu0 0
    %388 = vmatprep.subr.bf16.mxu0 0
    %389 = vmatpush1.bf16.msra.mxu0 0
    %390 = vmatprep.subr.bf16.mxu0 0
    %391 = vmatpush1.bf16.msra.mxu0 %v376
    %392 = vmatprep.subr.bf16.mxu0 0
    %393 = vmatpush1.bf16.msra.mxu0 %v271
    %394 = vmatprep.subr.bf16.mxu0 0
    %395 = vmatpush2.bf16.msra.mxu0 0
    %396 = vmatprep.subr.bf16.mxu0 0
    %397 = vmatpush2.bf16.msra.mxu0 0
    %398 = vmatprep.subr.bf16.mxu0 0
    %399 = vmatpush2.bf16.msra.mxu0 0
    %400 = vmatprep.subr.bf16.mxu0 0
    %401 = vmatpush2.bf16.msra.mxu0 0
    %402 = vmatprep.subr.bf16.mxu0 0
    %403 = vmatpush2.bf16.msra.mxu0 0
    %404 = vmatprep.subr.bf16.mxu0 0
    %405 = vmatpush2.bf16.msra.mxu0 0
    %406 = vmatprep.subr.bf16.mxu0 0
    %407 = vmatpush2.bf16.msra.mxu0 0
    %408 = vmatprep.subr.bf16.mxu0 0
    %409 = vmatpush2.bf16.msra.mxu0 0
    %410 = vmatprep.mubr.bf16.mxu0 0
    %411 = vmatmul.mubr.bf16.gmra.mxu0 %v276
    %v412 = vpop.f32.mrf.mxu0
    %v413 = vadd.f32 %v101, %v412
    %v414 = vpop.f32.mrf.mxu0
    %v415 = vpop.f32.mrf.mxu0
    %v416 = vadd.f32 %v101, %v415
    %v417 = vpop.f32.mrf.mxu0
    %418 = vmatprep.mubr.bf16.mxu0 0
    %419 = vmatmul.mubr.bf16.gmra.mxu0 %v279
    %v420 = vpop.f32.mrf.mxu0
    %v421 = vadd.f32 %v101, %v420
    %v422 = vpop.f32.mrf.mxu0
    %v423 = vpop.f32.mrf.mxu0
    %v424 = vadd.f32 %v101, %v423
    %v425 = vpop.f32.mrf.mxu0
    %426 = vmatprep.mubr.bf16.mxu0 0
    %427 = vmatmul.mubr.bf16.gmra.mxu0 %v282
    %v428 = vpop.f32.mrf.mxu0
    %v429 = vadd.f32 %v101, %v428
    %v430 = vpop.f32.mrf.mxu0
    %v431 = vpop.f32.mrf.mxu0
    %v432 = vadd.f32 %v101, %v431
    %v433 = vpop.f32.mrf.mxu0
    %434 = vmatprep.mubr.bf16.mxu0 0
    %435 = vmatmul.mubr.bf16.gmra.mxu0 %v285
    %v436 = vpop.f32.mrf.mxu0
    %v437 = vadd.f32 %v101, %v436
    %v438 = vpop.f32.mrf.mxu0
    %v439 = vpop.f32.mrf.mxu0
    %v440 = vadd.f32 %v101, %v439
    %v441 = vpop.f32.mrf.mxu0
    %442 = vmatprep.mubr.bf16.mxu0 0
    %443 = vmatmul.mubr.bf16.gmra.mxu0 %v288
    %v444 = vpop.f32.mrf.mxu0
    %v445 = vadd.f32 %v101, %v444
    %v446 = vpop.f32.mrf.mxu0
    %v447 = vpop.f32.mrf.mxu0
    %v448 = vadd.f32 %v101, %v447
    %v449 = vpop.f32.mrf.mxu0
    %450 = vmatprep.mubr.bf16.mxu0 0
    %451 = vmatmul.mubr.bf16.gmra.mxu0 %v291
    %v452 = vpop.f32.mrf.mxu0
    %v453 = vadd.f32 %v101, %v452
    %v454 = vpop.f32.mrf.mxu0
    %v455 = vpop.f32.mrf.mxu0
    %v456 = vadd.f32 %v101, %v455
    %v457 = vpop.f32.mrf.mxu0
    %458 = vmatprep.mubr.bf16.mxu0 0
    %459 = vmatmul.mubr.bf16.gmra.mxu0 %v294
    %v460 = vpop.f32.mrf.mxu0
    %v461 = vadd.f32 %v101, %v460
    %v462 = vpop.f32.mrf.mxu0
    %v463 = vpop.f32.mrf.mxu0
    %v464 = vadd.f32 %v101, %v463
    %v465 = vpop.f32.mrf.mxu0
    %466 = vmatprep.mubr.bf16.mxu0 0
    %467 = vmatmul.mubr.bf16.gmra.mxu0 %v297
    %v468 = vpop.f32.mrf.mxu0
    %v469 = vadd.f32 %v101, %v468
    %v470 = vpop.f32.mrf.mxu0
    %v471 = vpop.f32.mrf.mxu0
    %v472 = vadd.f32 %v101, %v471
    %v473 = vpop.f32.mrf.mxu0
    %474 = vmatprep.mubr.bf16.mxu0 0
    %475 = vmatmul.mubr.bf16.gmra.mxu0 %v300
    %v476 = vpop.f32.mrf.mxu0
    %v477 = vadd.f32 %v101, %v476
    %v478 = vpop.f32.mrf.mxu0
    %v479 = vpop.f32.mrf.mxu0
    %v480 = vadd.f32 %v101, %v479
    %v481 = vpop.f32.mrf.mxu0
    %482 = vmatprep.mubr.bf16.mxu0 0
    %483 = vmatmul.mubr.bf16.gmra.mxu0 %v303
    %v484 = vpop.f32.mrf.mxu0
    %v485 = vadd.f32 %v101, %v484
    %v486 = vpop.f32.mrf.mxu0
    %v487 = vpop.f32.mrf.mxu0
    %v488 = vadd.f32 %v101, %v487
    %v489 = vpop.f32.mrf.mxu0
    %490 = vmatprep.mubr.bf16.mxu0 0
    %491 = vmatmul.mubr.bf16.gmra.mxu0 %v306
    %v492 = vpop.f32.mrf.mxu0
    %v493 = vadd.f32 %v101, %v492
    %v494 = vpop.f32.mrf.mxu0
    %v495 = vpop.f32.mrf.mxu0
    %v496 = vadd.f32 %v101, %v495
    %v497 = vpop.f32.mrf.mxu0
    %498 = vmatprep.mubr.bf16.mxu0 0
    %499 = vmatmul.mubr.bf16.gmra.mxu0 %v309
    %v500 = vpop.f32.mrf.mxu0
    %v501 = vadd.f32 %v101, %v500
    %v502 = vpop.f32.mrf.mxu0
    %v503 = vpop.f32.mrf.mxu0
    %v504 = vadd.f32 %v101, %v503
    %v505 = vpop.f32.mrf.mxu0
    %506 = vmatprep.mubr.bf16.mxu0 0
    %507 = vmatmul.mubr.bf16.gmra.mxu0 %v312
    %v508 = vpop.f32.mrf.mxu0
    %v509 = vadd.f32 %v101, %v508
    %v510 = vpop.f32.mrf.mxu0
    %v511 = vpop.f32.mrf.mxu0
    %v512 = vadd.f32 %v101, %v511
    %v513 = vpop.f32.mrf.mxu0
    %514 = vmatprep.mubr.bf16.mxu0 0
    %515 = vmatmul.mubr.bf16.gmra.mxu0 %v315
    %v516 = vpop.f32.mrf.mxu0
    %v517 = vadd.f32 %v101, %v516
    %v518 = vpop.f32.mrf.mxu0
    %v519 = vpop.f32.mrf.mxu0
    %v520 = vadd.f32 %v101, %v519
    %v521 = vpop.f32.mrf.mxu0
    %522 = vmatprep.mubr.bf16.mxu0 0
    %523 = vmatmul.mubr.bf16.gmra.mxu0 %v318
    %v524 = vpop.f32.mrf.mxu0
    %v525 = vadd.f32 %v101, %v524
    %v526 = vpop.f32.mrf.mxu0
    %v527 = vpop.f32.mrf.mxu0
    %v528 = vadd.f32 %v101, %v527
    %v529 = vpop.f32.mrf.mxu0
    %530 = vmatprep.mubr.bf16.mxu0 0
    %531 = vmatmul.mubr.bf16.gmra.mxu0 %v321
    %v532 = vpop.f32.mrf.mxu0
    %v533 = vadd.f32 %v101, %v532
    %v534 = vpop.f32.mrf.mxu0
    %v535 = vpop.f32.mrf.mxu0
    %v536 = vadd.f32 %v101, %v535
    %v537 = vpop.f32.mrf.mxu0
    %538 = vmatprep.mubr.bf16.mxu0 0
    %539 = vmatmul.mubr.bf16.gmra.mxu0 %v324
    %v540 = vpop.f32.mrf.mxu0
    %v541 = vadd.f32 %v101, %v540
    %v542 = vpop.f32.mrf.mxu0
    %v543 = vpop.f32.mrf.mxu0
    %v544 = vadd.f32 %v101, %v543
    %v545 = vpop.f32.mrf.mxu0
    %546 = vmatprep.mubr.bf16.mxu0 0
    %547 = vmatmul.mubr.bf16.gmra.mxu0 %v327
    %v548 = vpop.f32.mrf.mxu0
    %v549 = vadd.f32 %v101, %v548
    %v550 = vpop.f32.mrf.mxu0
    %v551 = vpop.f32.mrf.mxu0
    %v552 = vadd.f32 %v101, %v551
    %v553 = vpop.f32.mrf.mxu0
    %554 = vmatprep.mubr.bf16.mxu0 0
    %555 = vmatmul.mubr.bf16.gmra.mxu0 %v330
    %v556 = vpop.f32.mrf.mxu0
    %v557 = vadd.f32 %v101, %v556
    %v558 = vpop.f32.mrf.mxu0
    %v559 = vpop.f32.mrf.mxu0
    %v560 = vadd.f32 %v101, %v559
    %v561 = vpop.f32.mrf.mxu0
    %562 = vmatprep.mubr.bf16.mxu0 0
    %563 = vmatmul.mubr.bf16.gmra.mxu0 %v333
    %v564 = vpop.f32.mrf.mxu0
    %v565 = vadd.f32 %v101, %v564
    %v566 = vpop.f32.mrf.mxu0
    %v567 = vpop.f32.mrf.mxu0
    %v568 = vadd.f32 %v101, %v567
    %v569 = vpop.f32.mrf.mxu0
    %570 = vmatprep.mubr.bf16.mxu0 0
    %571 = vmatmul.mubr.bf16.gmra.mxu0 %v336
    %v572 = vpop.f32.mrf.mxu0
    %v573 = vadd.f32 %v101, %v572
    %v574 = vpop.f32.mrf.mxu0
    %v575 = vpop.f32.mrf.mxu0
    %v576 = vadd.f32 %v101, %v575
    %v577 = vpop.f32.mrf.mxu0
    %578 = vmatprep.mubr.bf16.mxu0 0
    %579 = vmatmul.mubr.bf16.gmra.mxu0 %v339
    %v580 = vpop.f32.mrf.mxu0
    %v581 = vadd.f32 %v101, %v580
    %v582 = vpop.f32.mrf.mxu0
    %v583 = vpop.f32.mrf.mxu0
    %v584 = vadd.f32 %v101, %v583
    %v585 = vpop.f32.mrf.mxu0
    %586 = vmatprep.mubr.bf16.mxu0 0
    %587 = vmatmul.mubr.bf16.gmra.mxu0 %v342
    %v588 = vpop.f32.mrf.mxu0
    %v589 = vadd.f32 %v101, %v588
    %v590 = vpop.f32.mrf.mxu0
    %v591 = vpop.f32.mrf.mxu0
    %v592 = vadd.f32 %v101, %v591
    %v593 = vpop.f32.mrf.mxu0
    %594 = vmatprep.mubr.bf16.mxu0 0
    %595 = vmatmul.mubr.bf16.gmra.mxu0 %v345
    %v596 = vpop.f32.mrf.mxu0
    %v597 = vadd.f32 %v101, %v596
    %v598 = vpop.f32.mrf.mxu0
    %v599 = vpop.f32.mrf.mxu0
    %v600 = vadd.f32 %v101, %v599
    %v601 = vpop.f32.mrf.mxu0
    %602 = vmatprep.mubr.bf16.mxu0 0
    %603 = vmatmul.mubr.bf16.gmra.mxu0 %v348
    %v604 = vpop.f32.mrf.mxu0
    %v605 = vadd.f32 %v101, %v604
    %v606 = vpop.f32.mrf.mxu0
    %v607 = vpop.f32.mrf.mxu0
    %v608 = vadd.f32 %v101, %v607
    %v609 = vpop.f32.mrf.mxu0
    %610 = vmatprep.mubr.bf16.mxu0 0
    %611 = vmatmul.mubr.bf16.gmra.mxu0 %v351
    %v612 = vpop.f32.mrf.mxu0
    %v613 = vadd.f32 %v101, %v612
    %v614 = vpop.f32.mrf.mxu0
    %v615 = vpop.f32.mrf.mxu0
    %v616 = vadd.f32 %v101, %v615
    %v617 = vpop.f32.mrf.mxu0
    %618 = vmatprep.mubr.bf16.mxu0 0
    %619 = vmatmul.mubr.bf16.gmra.mxu0 %v354
    %v620 = vpop.f32.mrf.mxu0
    %v621 = vadd.f32 %v101, %v620
    %v622 = vpop.f32.mrf.mxu0
    %v623 = vpop.f32.mrf.mxu0
    %v624 = vadd.f32 %v101, %v623
    %v625 = vpop.f32.mrf.mxu0
    %626 = vmatprep.mubr.bf16.mxu0 0
    %627 = vmatmul.mubr.bf16.gmra.mxu0 %v357
    %v628 = vpop.f32.mrf.mxu0
    %v629 = vadd.f32 %v101, %v628
    %v630 = vpop.f32.mrf.mxu0
    %v631 = vpop.f32.mrf.mxu0
    %v632 = vadd.f32 %v101, %v631
    %v633 = vpop.f32.mrf.mxu0
    %634 = vmatprep.mubr.bf16.mxu0 0
    %635 = vmatmul.mubr.bf16.gmra.mxu0 %v360
    %v636 = vpop.f32.mrf.mxu0
    %v637 = vadd.f32 %v101, %v636
    %v638 = vpop.f32.mrf.mxu0
    %v639 = vpop.f32.mrf.mxu0
    %v640 = vadd.f32 %v101, %v639
    %v641 = vpop.f32.mrf.mxu0
    %642 = vmatprep.mubr.bf16.mxu0 0
    %643 = vmatmul.mubr.bf16.gmra.mxu0 %v363
    %v644 = vpop.f32.mrf.mxu0
    %v645 = vadd.f32 %v101, %v644
    %v646 = vpop.f32.mrf.mxu0
    %v647 = vpop.f32.mrf.mxu0
    %v648 = vadd.f32 %v101, %v647
    %v649 = vpop.f32.mrf.mxu0
    %650 = vmatprep.mubr.bf16.mxu0 0
    %651 = vmatmul.mubr.bf16.gmra.mxu0 %v366
    %v652 = vpop.f32.mrf.mxu0
    %v653 = vadd.f32 %v101, %v652
    %v654 = vpop.f32.mrf.mxu0
    %v655 = vpop.f32.mrf.mxu0
    %v656 = vadd.f32 %v101, %v655
    %v657 = vpop.f32.mrf.mxu0
    %658 = vmatprep.mubr.bf16.mxu0 0
    %659 = vmatmul.mubr.bf16.gmra.mxu0 %v369
    %v660 = vpop.f32.mrf.mxu0
    %v661 = vadd.f32 %v101, %v660
    %v662 = vpop.f32.mrf.mxu0
    %v663 = vpop.f32.mrf.mxu0
    %v664 = vadd.f32 %v101, %v663
    %v665 = vpop.f32.mrf.mxu0
    %666 = vdwg.mxu0
    %v667 = vmax.f32 %v413, 0.0
    %v668 = vmax.f32 %v416, 0.0
    %v669 = vmax.f32 %v421, 0.0
    %v670 = vmax.f32 %v424, 0.0
    %v671 = vmax.f32 %v429, 0.0
    %v672 = vmax.f32 %v432, 0.0
    %v673 = vmax.f32 %v437, 0.0
    %v674 = vmax.f32 %v440, 0.0
    %v675 = vmax.f32 %v445, 0.0
    %v676 = vmax.f32 %v448, 0.0
    %v677 = vmax.f32 %v453, 0.0
    %v678 = vmax.f32 %v456, 0.0
    %v679 = vmax.f32 %v461, 0.0
    %v680 = vmax.f32 %v464, 0.0
    %v681 = vmax.f32 %v469, 0.0
    %v682 = vmax.f32 %v472, 0.0
    %v683 = vmax.f32 %v477, 0.0
    %v684 = vmax.f32 %v480, 0.0
    %v685 = vmax.f32 %v485, 0.0
    %v686 = vmax.f32 %v488, 0.0
    %v687 = vmax.f32 %v493, 0.0
    %v688 = vmax.f32 %v496, 0.0
    %v689 = vmax.f32 %v501, 0.0
    %v690 = vmax.f32 %v504, 0.0
    %v691 = vmax.f32 %v509, 0.0
    %v692 = vmax.f32 %v512, 0.0
    %v693 = vmax.f32 %v517, 0.0
    %v694 = vmax.f32 %v520, 0.0
    %v695 = vmax.f32 %v525, 0.0
    %v696 = vmax.f32 %v528, 0.0
    %v697 = vmax.f32 %v533, 0.0
    %v698 = vmax.f32 %v536, 0.0
    %v699 = vmax.f32 %v541, 0.0
    %v700 = vmax.f32 %v544, 0.0
    %v701 = vmax.f32 %v549, 0.0
    %v702 = vmax.f32 %v552, 0.0
    %v703 = vmax.f32 %v557, 0.0
    %v704 = vmax.f32 %v560, 0.0
    %v705 = vmax.f32 %v565, 0.0
    %v706 = vmax.f32 %v568, 0.0
    %v707 = vmax.f32 %v573, 0.0
    %v708 = vmax.f32 %v576, 0.0
    %v709 = vmax.f32 %v581, 0.0
    %v710 = vmax.f32 %v584, 0.0
    %v711 = vmax.f32 %v589, 0.0
    %v712 = vmax.f32 %v592, 0.0
    %v713 = vmax.f32 %v597, 0.0
    %v714 = vmax.f32 %v600, 0.0
    %v715 = vmax.f32 %v605, 0.0
    %v716 = vmax.f32 %v608, 0.0
    %v717 = vmax.f32 %v613, 0.0
    %v718 = vmax.f32 %v616, 0.0
    %v719 = vmax.f32 %v621, 0.0
    %v720 = vmax.f32 %v624, 0.0
    %v721 = vmax.f32 %v629, 0.0
    %v722 = vmax.f32 %v632, 0.0
    %v723 = vmax.f32 %v637, 0.0
    %v724 = vmax.f32 %v640, 0.0
    %v725 = vmax.f32 %v645, 0.0
    %v726 = vmax.f32 %v648, 0.0
    %v727 = vmax.f32 %v653, 0.0
    %v728 = vmax.f32 %v656, 0.0
    %v729 = vmax.f32 %v661, 0.0
    %v730 = vmax.f32 %v664, 0.0
    %v731 = vld [vmem:[%s3] sm:$0xff]
    %v732 = vld [vmem:[%s3 + $0x8] sm:$0xff]
    %v733 = vld [vmem:[%s3 + $0x10] sm:$0xff]
    %v734 = vld [vmem:[%s3 + $0x18] sm:$0xff]
    %v735 = vld [vmem:[%s3 + $0x20] sm:$0xff]
    %v736 = vld [vmem:[%s3 + $0x28] sm:$0xff]
    %v737 = vld [vmem:[%s3 + $0x30] sm:$0xff]
    %v738 = vld [vmem:[%s3 + $0x38] sm:$0xff]
    %v739 = vpack.c.bf16 %v668, %v667
    %v740 = vpack.c.bf16 %v670, %v669
    %v741 = vpack.c.bf16 %v672, %v671
    %v742 = vpack.c.bf16 %v674, %v673
    %v743 = vpack.c.bf16 %v676, %v675
    %v744 = vpack.c.bf16 %v678, %v677
    %v745 = vpack.c.bf16 %v680, %v679
    %v746 = vpack.c.bf16 %v682, %v681
    %v747 = vpack.c.bf16 %v684, %v683
    %v748 = vpack.c.bf16 %v686, %v685
    %v749 = vpack.c.bf16 %v688, %v687
    %v750 = vpack.c.bf16 %v690, %v689
    %v751 = vpack.c.bf16 %v692, %v691
    %v752 = vpack.c.bf16 %v694, %v693
    %v753 = vpack.c.bf16 %v696, %v695
    %v754 = vpack.c.bf16 %v698, %v697
    %v755 = vpack.c.bf16 %v700, %v699
    %v756 = vpack.c.bf16 %v702, %v701
    %v757 = vpack.c.bf16 %v704, %v703
    %v758 = vpack.c.bf16 %v706, %v705
    %v759 = vpack.c.bf16 %v708, %v707
    %v760 = vpack.c.bf16 %v710, %v709
    %v761 = vpack.c.bf16 %v712, %v711
    %v762 = vpack.c.bf16 %v714, %v713
    %v763 = vpack.c.bf16 %v716, %v715
    %v764 = vpack.c.bf16 %v718, %v717
    %v765 = vpack.c.bf16 %v720, %v719
    %v766 = vpack.c.bf16 %v722, %v721
    %v767 = vpack.c.bf16 %v724, %v723
    %v768 = vpack.c.bf16 %v726, %v725
    %v769 = vpack.c.bf16 %v728, %v727
    %v770 = vpack.c.bf16 %v730, %v729
    %v779 = vunpack.c.l.b16 %v731
    %v780 = vunpack.c.h.b16 %v731
    %v781 = vunpack.c.l.b16 %v732
    %v782 = vunpack.c.h.b16 %v732
    %v783 = vunpack.c.l.b16 %v733
    %v784 = vunpack.c.h.b16 %v733
    %v785 = vunpack.c.l.b16 %v734
    %v786 = vunpack.c.h.b16 %v734
    %v787 = vunpack.c.l.b16 %v735
    %v788 = vunpack.c.h.b16 %v735
    %v789 = vunpack.c.l.b16 %v736
    %v790 = vunpack.c.h.b16 %v736
    %v791 = vunpack.c.l.b16 %v737
    %v792 = vunpack.c.h.b16 %v737
    %v793 = vunpack.c.l.b16 %v738
    %v794 = vunpack.c.h.b16 %v738
    %v795 = vpack.c.b16 %v783, %v779
    %v796 = vpack.c.b16 %v784, %v780
    %v797 = vpack.c.b16 %v785, %v781
    %v798 = vpack.c.b16 %v786, %v782
    %v799 = vpack.c.b16 %v791, %v787
    %v800 = vpack.c.b16 %v792, %v788
    %v801 = vpack.c.b16 %v793, %v789
    %v802 = vpack.c.b16 %v794, %v790
    %811 = vmatprep.subr.bf16.mxu0 0
    %812 = vmatpush1.bf16.msra.mxu0 %v746
    %813 = vmatprep.subr.bf16.mxu0 0
    %814 = vmatpush1.bf16.msra.mxu0 %v745
    %815 = vmatprep.subr.bf16.mxu0 0
    %816 = vmatpush1.bf16.msra.mxu0 %v744
    %817 = vmatprep.subr.bf16.mxu0 0
    %818 = vmatpush1.bf16.msra.mxu0 %v743
    %819 = vmatprep.subr.bf16.mxu0 0
    %820 = vmatpush1.bf16.msra.mxu0 %v742
    %821 = vmatprep.subr.bf16.mxu0 0
    %822 = vmatpush1.bf16.msra.mxu0 %v741
    %823 = vmatprep.subr.bf16.mxu0 0
    %824 = vmatpush1.bf16.msra.mxu0 %v740
    %825 = vmatprep.subr.bf16.mxu0 0
    %826 = vmatpush1.bf16.msra.mxu0 %v739
    %827 = vmatprep.subr.bf16.mxu0 0
    %828 = vmatpush2.bf16.msra.mxu0 %v754
    %829 = vmatprep.subr.bf16.mxu0 0
    %830 = vmatpush2.bf16.msra.mxu0 %v753
    %831 = vmatprep.subr.bf16.mxu0 0
    %832 = vmatpush2.bf16.msra.mxu0 %v752
    %833 = vmatprep.subr.bf16.mxu0 0
    %834 = vmatpush2.bf16.msra.mxu0 %v751
    %835 = vmatprep.subr.bf16.mxu0 0
    %836 = vmatpush2.bf16.msra.mxu0 %v750
    %837 = vmatprep.subr.bf16.mxu0 0
    %838 = vmatpush2.bf16.msra.mxu0 %v749
    %839 = vmatprep.subr.bf16.mxu0 0
    %840 = vmatpush2.bf16.msra.mxu0 %v748
    %841 = vmatprep.subr.bf16.mxu0 0
    %842 = vmatpush2.bf16.msra.mxu0 %v747
    %843 = vmatprep.mubr.bf16.mxu0 %v796
    %844 = vmatmul.mubr.bf16.gmra.mxu0 %v795
    %v845 = vpop.f32.mrf.mxu0
    %v846 = vadd.f32 0.0, %v845
    %v847 = vpop.f32.mrf.mxu0
    %v848 = vpop.f32.mrf.mxu0
    %v849 = vadd.f32 0.0, %v848
    %v850 = vpop.f32.mrf.mxu0
    %851 = vmatprep.mubr.bf16.mxu0 %v800
    %852 = vmatmul.mubr.bf16.gmra.mxu0 %v799
    %v853 = vpop.f32.mrf.mxu0
    %v854 = vadd.f32 0.0, %v853
    %v855 = vpop.f32.mrf.mxu0
    %v856 = vpop.f32.mrf.mxu0
    %v857 = vadd.f32 0.0, %v856
    %v858 = vpop.f32.mrf.mxu0
    %859 = vdwg.mxu0
    %860 = vmatprep.subr.bf16.mxu0 0
    %861 = vmatpush1.bf16.msra.mxu0 %v762
    %862 = vmatprep.subr.bf16.mxu0 0
    %863 = vmatpush1.bf16.msra.mxu0 %v761
    %864 = vmatprep.subr.bf16.mxu0 0
    %865 = vmatpush1.bf16.msra.mxu0 %v760
    %866 = vmatprep.subr.bf16.mxu0 0
    %867 = vmatpush1.bf16.msra.mxu0 %v759
    %868 = vmatprep.subr.bf16.mxu0 0
    %869 = vmatpush1.bf16.msra.mxu0 %v758
    %870 = vmatprep.subr.bf16.mxu0 0
    %871 = vmatpush1.bf16.msra.mxu0 %v757
    %872 = vmatprep.subr.bf16.mxu0 0
    %873 = vmatpush1.bf16.msra.mxu0 %v756
    %874 = vmatprep.subr.bf16.mxu0 0
    %875 = vmatpush1.bf16.msra.mxu0 %v755
    %876 = vmatprep.subr.bf16.mxu0 0
    %877 = vmatpush2.bf16.msra.mxu0 %v770
    %878 = vmatprep.subr.bf16.mxu0 0
    %879 = vmatpush2.bf16.msra.mxu0 %v769
    %880 = vmatprep.subr.bf16.mxu0 0
    %881 = vmatpush2.bf16.msra.mxu0 %v768
    %882 = vmatprep.subr.bf16.mxu0 0
    %883 = vmatpush2.bf16.msra.mxu0 %v767
    %884 = vmatprep.subr.bf16.mxu0 0
    %885 = vmatpush2.bf16.msra.mxu0 %v766
    %886 = vmatprep.subr.bf16.mxu0 0
    %887 = vmatpush2.bf16.msra.mxu0 %v765
    %888 = vmatprep.subr.bf16.mxu0 0
    %889 = vmatpush2.bf16.msra.mxu0 %v764
    %890 = vmatprep.subr.bf16.mxu0 0
    %891 = vmatpush2.bf16.msra.mxu0 %v763
    %892 = vmatprep.mubr.bf16.mxu0 %v798
    %893 = vmatmul.mubr.bf16.gmra.mxu0 %v797
    %v894 = vpop.f32.mrf.mxu0
    %v895 = vadd.f32 %v846, %v894
    %v896 = vpop.f32.mrf.mxu0
    %v897 = vpop.f32.mrf.mxu0
    %v898 = vadd.f32 %v849, %v897
    %v899 = vpop.f32.mrf.mxu0
    %900 = vmatprep.mubr.bf16.mxu0 %v802
    %901 = vmatmul.mubr.bf16.gmra.mxu0 %v801
    %v902 = vpop.f32.mrf.mxu0
    %v903 = vadd.f32 %v854, %v902
    %v904 = vpop.f32.mrf.mxu0
    %v905 = vpop.f32.mrf.mxu0
    %v906 = vadd.f32 %v857, %v905
    %v907 = vpop.f32.mrf.mxu0
    %908 = vdwg.mxu0
    %vm909 = vcmask 261120
    %910 = vst.msk [vmem:[#allocation2] sm:$0xff] %vm909, %v895
    %911 = vst.msk [vmem:[#allocation2 + $0x8] sm:$0xff] %vm909, %v898
    %912 = vst.msk [vmem:[#allocation2 + $0x10] sm:$0xff] %vm909, %v903
    %913 = vst.msk [vmem:[#allocation2 + $0x18] sm:$0xff] %vm909, %v906
    %v914 = vsel %vm909, %v895, 0.0
    %v915 = vsel %vm909, %v898, 0.0
    %v916 = vadd.f32 %v914, %v915
    %v917 = vrot.slane %v916, 4
    %v918 = vadd.f32 %v916, %v917
    %v919 = vrot.slane %v918, 2
    %v920 = vadd.f32 %v918, %v919
    %v921 = vrot.slane %v920, 1
    %v922 = vadd.f32 %v920, %v921
    %v923 = vsel %vm909, %v903, 0.0
    %v924 = vsel %vm909, %v906, 0.0
    %v925 = vadd.f32 %v923, %v924
    %v926 = vrot.slane %v925, 4
    %v927 = vadd.f32 %v925, %v926
    %v928 = vrot.slane %v927, 2
    %v929 = vadd.f32 %v927, %v928
    %v930 = vrot.slane %v929, 1
    %v931 = vadd.f32 %v929, %v930
    %v932 = vrcp.pop 16.0
    %v933 = vmul.f32 %v922, %v932
    %v934 = vmul.f32 %v931, %v932
    %v935 = vpack.c.bf16 %v933, %v933
    %v936 = vpack.c.bf16 %v934, %v934
    %v937 = vld [vmem:[%s4] sm:$0xf]
    %v938 = vld [vmem:[%s4 + $0x4] sm:$0xf]
    %v939 = vld [vmem:[%s4 + $0x8] sm:$0xf]
    %v940 = vld [vmem:[%s4 + $0xc] sm:$0xf]
    %v941 = vld [vmem:[%s5] sm:$0x1]
    %v943 = vlaneseq
    %v944 = vshrl.u32 %v943, 7
    %v945 = vsub.s32 0, %v944
    %v946 = vrot.slane %v941, %v945
    %v950 = vunpack.c.l.b16 %v935
    %v951 = vunpack.c.l.b16 %v936
    %vm952 = vcmask 1041409
    %v953 = vsel %vm952, %v951, %v950
    %v954 = vpack.c.b16 %v953, %v953
    %v959 = vunpack.c.l.b16 %v937
    %v960 = vunpack.c.l.b16 %v938
    %v961 = vunpack.c.l.b16 %v939
    %v962 = vunpack.c.l.b16 %v940
    %v963 = vpack.c.b16 %v960, %v959
    %v964 = vpack.c.b16 %v962, %v961
    %v968 = vsel %vm909, %v954, 0
    %970 = vmatprep.subr.bf16.mxu0 0
    %971 = vmatpush1.bf16.msra.mxu0 0
    %972 = vmatprep.subr.bf16.mxu0 0
    %973 = vmatpush1.bf16.msra.mxu0 0
    %974 = vmatprep.subr.bf16.mxu0 0
    %975 = vmatpush1.bf16.msra.mxu0 0
    %976 = vmatprep.subr.bf16.mxu0 0
    %977 = vmatpush1.bf16.msra.mxu0 0
    %978 = vmatprep.subr.bf16.mxu0 0
    %979 = vmatpush1.bf16.msra.mxu0 0
    %980 = vmatprep.subr.bf16.mxu0 0
    %981 = vmatpush1.bf16.msra.mxu0 0
    %982 = vmatprep.subr.bf16.mxu0 0
    %983 = vmatpush1.bf16.msra.mxu0 %v964
    %984 = vmatprep.subr.bf16.mxu0 0
    %985 = vmatpush1.bf16.msra.mxu0 %v963
    %986 = vmatprep.subr.bf16.mxu0 0
    %987 = vmatpush2.bf16.msra.mxu0 0
    %988 = vmatprep.subr.bf16.mxu0 0
    %989 = vmatpush2.bf16.msra.mxu0 0
    %990 = vmatprep.subr.bf16.mxu0 0
    %991 = vmatpush2.bf16.msra.mxu0 0
    %992 = vmatprep.subr.bf16.mxu0 0
    %993 = vmatpush2.bf16.msra.mxu0 0
    %994 = vmatprep.subr.bf16.mxu0 0
    %995 = vmatpush2.bf16.msra.mxu0 0
    %996 = vmatprep.subr.bf16.mxu0 0
    %997 = vmatpush2.bf16.msra.mxu0 0
    %998 = vmatprep.subr.bf16.mxu0 0
    %999 = vmatpush2.bf16.msra.mxu0 0
    %1000 = vmatprep.subr.bf16.mxu0 0
    %1001 = vmatpush2.bf16.msra.mxu0 0
    %1002 = vmatprep.mubr.bf16.mxu0 0
    %1003 = vmatmul.mubr.bf16.gmra.mxu0 %v968
    %v1004 = vpop.f32.mrf.mxu0
    %v1005 = vadd.f32 %v946, %v1004
    %v1006 = vpop.f32.mrf.mxu0
    %v1007 = vpop.f32.mrf.mxu0
    %v1008 = vpop.f32.mrf.mxu0
    %1009 = vdwg.mxu0
    %vm1010 = vcmask 74752
    %1011 = vst.msk [vmem:[#allocation4] sm:$0x3] %vm1010, %v1005
    // Predicated region
    $region26: #{tpu_custom_call.1} parent=1 // pred_check
      _
    $region27: #{tpu_custom_call.1} parent=1 // pred_check_branch
      %1013 = sbr.rel (0) target = $region29
    $region28: #{tpu_custom_call.1} parent=1 // pred_region
      %s1015 = ssub.s32 512, 512
      %1016 = vsyncadd [#allocation3], %s1015
      %s1017 = sshll.u32 [#allocation2], 4
      %s1018 = int_to_ptr.vmem [resolvable:$true] %s1017
      %1023 = dma.vmem_to_hbm [thread:$0]  %s1018, 512, %s6, [#allocation3], 128, 128, 8
    $region29: #{tpu_custom_call.1} parent=1 // pred_fallthru
      _
    // Predicated region
    $region30: #{tpu_custom_call.1} parent=1 // pred_check
      _
    $region31: #{tpu_custom_call.1} parent=1 // pred_check_branch
      %1025 = sbr.rel (0) target = $region33
    $region32: #{tpu_custom_call.1} parent=1 // pred_region
      %s1027 = ssub.s32 32, 32
      %1028 = vsyncadd [#allocation5], %s1027
      %s1030 = sshll.u32 [#allocation4], 4
      %s1031 = int_to_ptr.vmem [resolvable:$true] %s1030
      %1033 = dma.vmem_to_hbm [thread:$0]  %s1031, 32, %s7, [#allocation5]
    $region33: #{tpu_custom_call.1} parent=1 // pred_fallthru
      _
    // Predicated region
    $region34: #{tpu_custom_call.1} parent=1 // pred_check
      _
    $region35: #{tpu_custom_call.1} parent=1 // pred_check_branch
      %1035 = sbr.rel (0) target = $region37
    $region36: #{tpu_custom_call.1} parent=1 // pred_region
      %1036 = dma.done [#allocation3], 512
    $region37: #{tpu_custom_call.1} parent=1 // pred_fallthru
      _
    // Predicated region
    $region38: #{tpu_custom_call.1} parent=1 // pred_check
      _
    $region39: #{tpu_custom_call.1} parent=1 // pred_check_branch
      %1038 = sbr.rel (0) target = $region41
    $region40: #{tpu_custom_call.1} parent=1 // pred_region
      %1039 = dma.done [#allocation5], 32
    $region41: #{tpu_custom_call.1} parent=1 // pred_fallthru
      _
    %1040 = vsyncpa [#allocation3], 1
    %1041 = vsyncpa [#allocation5], 1

</llo_original>
